<compile_context>
chip_gen: v6e
topology: v6e:2x2x1
jax: 0.10.0
libtpu: 0.0.40
codegen_flags: <defaults>
</compile_context>

<pallas_src>
import math

import jax
import jax.numpy as jnp
from jax.experimental import pallas as pl
from jax.experimental.pallas import tpu as pltpu


# ----------------------------- Pallas kernels ------------------------------ #

def _support_kernel(x_ref, w_ref, o_ref):
    """support[i-tile] = x[i-tile] @ W   (tiny prologue matmul)."""
    o_ref[...] = jnp.dot(x_ref[...], w_ref[...],
                         preferred_element_type=jnp.float32).astype(o_ref.dtype)


def _adj_support_kernel(adj_ref, sup_ref, b_ref, o_ref, acc_ref):
    """out[i-tile] = sum_k adj[i-tile, k-tile] @ support[k-tile] + bias.

    adj_ref : (tm, tk) block, streamed over the k grid axis
    sup_ref : (N, F_out) fully VMEM-resident support = x @ W
    b_ref   : (1, F_out) bias row (zeros when the module has no bias)
    acc_ref : (tm, F_out) f32 accumulator (is the output tile directly)
    """
    k = pl.program_id(1)
    tk = adj_ref.shape[1]
    start = pl.multiple_of(k * tk, tk)

    part = jnp.dot(adj_ref[...], sup_ref[pl.ds(start, tk), :],
                   preferred_element_type=jnp.float32)

    @pl.when(k == 0)
    def _():
        # Fold bias into the accumulator init; no zeros-then-add pass.
        acc_ref[...] = part + b_ref[...]

    @pl.when(k > 0)
    def _():
        acc_ref[...] += part

    @pl.when(k == pl.num_programs(1) - 1)
    def _():
        o_ref[...] = acc_ref[...].astype(o_ref.dtype)


# ------------------------------ Wrapper ------------------------------------ #

def graph_convolution(x, adj, weight, bias=None, *,
                      row_tile=256, k_tile=1024, use_bf16=False):
    """Pallas implementation of GraphConvolution.forward.

    x      : [N, F_in]  float32  (node features)
    adj    : [N, N]     float32  (dense row-normalized adjacency; spmm stand-in)
    weight : [F_in, F_out]
    bias   : [F_out] or None
    """
    N, F_in = x.shape
    F_out = weight.shape[1]

    tm = min(row_tile, N)            # output-row tile (MXU M)
    # v7x has 2 TensorCores: make sure the "parallel" row axis has >= 2 programs.
    if N // tm < 2 and tm % 16 == 0:
        tm //= 2
    tk = min(k_tile, N)              # contraction tile over adj columns
    assert N % tm == 0, "N must be divisible by the row tile"
    assert N % tk == 0, "N must be divisible by the contraction tile"
    # TODO(synk): ragged last tiles (N not a multiple of the tiles) need
    # masking/padding before this is production-safe.

    f32 = jnp.float32
    comp_dtype = jnp.bfloat16 if use_bf16 else f32
    itemsize = 2 if use_bf16 else 4

    # ---- Stage 1: support = x @ W (tiny; N x F_out) ---- #
    support = pl.pallas_call(
        _support_kernel,
        out_shape=jax.ShapeDtypeStruct((N, F_out), comp_dtype),
        grid_spec=pltpu.PrefetchScalarGridSpec(
            num_scalar_prefetch=0,
            grid=(N // tm,),
            in_specs=[pl.BlockSpec((tm, F_in), lambda i: (i, 0)),
                      pl.BlockSpec((F_in, F_out), lambda i: (0, 0))],
            out_specs=pl.BlockSpec((tm, F_out), lambda i: (i, 0)),
        ),
        compiler_params=pltpu.CompilerParams(
            dimension_semantics=("parallel",),
        ),
        cost_estimate=pl.CostEstimate(
            flops=int(2 * N * F_in * F_out),
            transcendentals=0,
            bytes_accessed=int(4 * (N * F_in + F_in * F_out)
                               + itemsize * N * F_out),
        ),
    )(x.astype(f32), weight.astype(f32))

    # ---- Stage 2: out = adj @ support + bias ---- #
    adj_in = adj.astype(comp_dtype)
    if bias is not None:
        bias2d = bias.reshape(1, F_out).astype(f32)
    else:
        bias2d = jnp.zeros((1, F_out), f32)

    grid = (N // tm, N // tk)

    cost = pl.CostEstimate(
        flops=int(2 * N * N * F_out),
        transcendentals=0,
        bytes_accessed=int(itemsize * N * N           # adj stream (dominant)
                           + itemsize * N * F_out     # resident support
                           + 4 * F_out                # bias
                           + 4 * N * F_out),          # output
    )

    # Need-based VMEM budget (+~30% headroom); no 32 MiB floor, and never the
    # full 64 MiB of a v7x TensorCore.
    need = (2 * tm * tk * itemsize       # adj block, double-buffered
            + 2 * N * F_out * itemsize   # resident support (2x for safety)
            + 2 * F_out * 4              # bias row
            + 2 * tm * F_out * 4         # output tile (double-buffered)
            + tm * F_out * 4)            # f32 accumulator scratch
    vmem_limit = int(min(max(int(need * 1.3), 1 << 20), 48 * 1024 * 1024))

    out = pl.pallas_call(
        _adj_support_kernel,
        out_shape=jax.ShapeDtypeStruct((N, F_out), f32),
        grid_spec=pltpu.PrefetchScalarGridSpec(
            num_scalar_prefetch=0,
            grid=grid,
            in_specs=[pl.BlockSpec((tm, tk), lambda i, k: (i, k)),        # adj
                      pl.BlockSpec((N, F_out), lambda i, k: (0, 0)),      # support (resident)
                      pl.BlockSpec((1, F_out), lambda i, k: (0, 0))],     # bias
            out_specs=pl.BlockSpec((tm, F_out), lambda i, k: (i, 0)),
            scratch_shapes=[pltpu.VMEM((tm, F_out), f32)],
        ),
        compiler_params=pltpu.CompilerParams(
            dimension_semantics=("parallel", "arbitrary"),
            vmem_limit_bytes=vmem_limit,
        ),
        cost_estimate=cost,
    )(adj_in, support, bias2d)
    return out


# ------------------------------ Main ---------------------------------------- #

if __name__ == "__main__":
    key = jax.random.PRNGKey(0)
    k_x, k_adj, k_w, k_b = jax.random.split(key, 4)

    # Small shapes consistent with the module: N graph nodes, feature dims.
    N, F_in, F_out = 256, 64, 128

    # Deterministic parameter init mirroring reset_parameters():
    #   stdv = 1/sqrt(out_features); weight,bias ~ U(-stdv, stdv)
    stdv = 1.0 / math.sqrt(F_out)
    weight = jax.random.uniform(k_w, (F_in, F_out), jnp.float32,
                                minval=-stdv, maxval=stdv)
    bias = jax.random.uniform(k_b, (F_out,), jnp.float32,
                              minval=-stdv, maxval=stdv)

    # Node features.
    x = jax.random.uniform(k_x, (N, F_in), jnp.float32)

    # Dense row-normalized "adjacency" standing in for the sparse adj of spmm.
    raw = (jax.random.uniform(k_adj, (N, N), jnp.float32) > 0.9).astype(jnp.float32)
    raw = raw + jnp.eye(N, dtype=jnp.float32)            # self loops
    deg = jnp.sum(raw, axis=1, keepdims=True)
    adj = raw / deg

    # Bias path.
    out = graph_convolution(x, adj, weight, bias)
    out = jax.block_until_ready(out)
    ref = adj @ (x @ weight) + bias
    assert out.shape == (N, F_out)
    assert jnp.allclose(out, ref, atol=1e-4, rtol=1e-4), "mismatch vs reference (bias)"

    # No-bias path (bias=False in the module constructor).
    out_nb = graph_convolution(x, adj, weight, None)
    out_nb = jax.block_until_ready(out_nb)
    ref_nb = adj @ (x @ weight)
    assert jnp.allclose(out_nb, ref_nb, atol=1e-4, rtol=1e-4), "mismatch vs reference (no bias)"

    print("KERNEL_OK")
</pallas_src>

<mosaic_0001>
module attributes {stable_mosaic.version = 11 : i64} {
  func.func @_support_kernel(%arg0: i32, %arg1: memref<128x64xf32, #tpu.memory_space<vmem>>, %arg2: memref<64x128xf32, #tpu.memory_space<vmem>>, %arg3: memref<128x128xf32, #tpu.memory_space<vmem>>) attributes {dimension_semantics = [#tpu.dimension_semantics<parallel>], iteration_bounds = array<i64: 2>, scalar_prefetch = 0 : i64, scratch_operands = 0 : i64, tpu.core_type = #tpu.core_type<tc>, window_params = [{transform_indices = @transform_0, window_bounds = array<i64: 128, 64>}, {pipeline_mode = #tpu.pipeline_mode<synchronous>, transform_indices = @transform_1, window_bounds = array<i64: 64, 128>}, {transform_indices = @transform_2, window_bounds = array<i64: 128, 128>}]} {
    %c0 = arith.constant 0 : index
    %c0_0 = arith.constant 0 : index
    %0 = vector.load %arg1[%c0, %c0_0] : memref<128x64xf32, #tpu.memory_space<vmem>>, vector<128x64xf32>
    %c0_1 = arith.constant 0 : index
    %c0_2 = arith.constant 0 : index
    %1 = vector.load %arg2[%c0_1, %c0_2] : memref<64x128xf32, #tpu.memory_space<vmem>>, vector<64x128xf32>
    %cst = arith.constant dense<0.000000e+00> : vector<128x128xf32>
    %2 = tpu.matmul %0, %1, %cst {dimension_numbers = #tpu.dot_dimension_numbers<[1], [0], [0], [1], [0, 0, 1, 1], [], []>} : vector<128x64xf32>, vector<64x128xf32>, vector<128x128xf32> -> vector<128x128xf32>
    %c0_3 = arith.constant 0 : index
    %c0_4 = arith.constant 0 : index
    %3 = vector.load %arg3[%c0_3, %c0_4] : memref<128x128xf32, #tpu.memory_space<vmem>>, vector<128x128xf32>
    tpu.vector_store %arg3[%c0_3, %c0_4], %2 {strides = array<i32>} : memref<128x128xf32, #tpu.memory_space<vmem>>, vector<128x128xf32>,
    return
  }
  func.func @transform_0(%arg0: i32) -> (i32, i32) {
    %c0_i32 = arith.constant 0 : i32
    %c0_i32_0 = arith.constant 0 : i32
    return %arg0, %c0_i32 : i32, i32
  }
  func.func @transform_1(%arg0: i32) -> (i32, i32) {
    %c0_i32 = arith.constant 0 : i32
    %c0_i32_0 = arith.constant 0 : i32
    %c0_i32_1 = arith.constant 0 : i32
    return %c0_i32, %c0_i32_0 : i32, i32
  }
  func.func @transform_2(%arg0: i32) -> (i32, i32) {
    %c0_i32 = arith.constant 0 : i32
    %c0_i32_0 = arith.constant 0 : i32
    return %arg0, %c0_i32 : i32, i32
  }
}

</mosaic_0001>

<llo_original>
// kernel: tpu_custom_call.1
$region0: #{tpu_custom_call.1}
  #allocation0 [shape = 'u32[]', space=smem, size = 0x4, offset = 0x4, fixed_abs, tag = 'smem constant byte address 0x4 - core index']
  #allocation1 [shape = 'u32[144,128]{1,0:T(1,128)}', space=vmem, size = 0x12000, scoped, tag = 'internal scratch']
  %s0 = inlined_call_operand.vmem [shape: f32[256,64], index: 0, kind: input, shape index: {}]
  %s1 = inlined_call_operand.vmem [shape: f32[64,128], index: 1, kind: input, shape index: {}]
  %s2 = inlined_call_operand.hbm [shape: f32[256,128], index: 2, kind: output, shape index: {}]
  %s3 = sld [smem:[#allocation0]]
  $region41: #{tpu_custom_call.1} parent=0
    _
  %s5 = ssub.s32 1, %s3
  %s6 = scalar_select 0, %s5, %s3
  $region1: #{tpu_custom_call.1} parent=0
    #allocation2 [shape = 'u8[131072]{0}', space=vmem, size = 0x20000, scoped, tag = 'output window, operand 0']
    #allocation3 [shape = 's32[2]{0}', space=sflag, size = 0x8, scoped, tag = 'scoped memory for tpu_custom_call.1']
    %7 = vsyncpa [#allocation3], 0
    %s8 = scalar_lea.sflag [#allocation3], 1
    %9 = vsyncpa %s8, 0
    loop: start=0, step=1, limit=4
    $region2: #{tpu_custom_call.1} parent=1 // loop_pre_header
      _
    $region3: #{tpu_custom_call.1} parent=1 // loop_header
      %s11 = sphi 0, %s15
      %p12 = scmp.ge.s32.totalorder %s11, 4
      %s21 = sphi 0, %s23
      %s24 = sphi 0, %s21
      %s25 = sphi 0, %s24
      %s41 = sphi 0, %s25
      %s45 = sphi 0, %s45
      %s47 = sphi 0, %s45
      %s48 = sphi 0, %s47
      %s62 = sphi 0, %s48
      %s68 = sphi 0, %s70
      %s71 = sphi 0, %s68
      %s72 = sphi 0, %s71
      %s88 = sphi 0, %s72
    $region4: #{tpu_custom_call.1} parent=1 // loop_header_branch
      %14 = sbr.rel (%p12) target = $region8
    $region5: #{tpu_custom_call.1} parent=1 // loop_body
      %s16 = ssub.s32 %s11, 1
      %s17 = ssub.s32 %s11, 2
      %s18 = sadd.s32 %s11, 1
      %s19 = ssub.s32 %s11, %s18
      %p20 = scmp.eq.s32.totalorder %s19, 0
      %s22 = sadd.s32 %s21, 1
      %s23 = scalar_select %p20, %s21, %s22
      %p26 = pneg %p20
      %p27 = scmp.eq.s32.totalorder %s11, 1
      %p28 = por %p26, %p27
      %p29 = scmp.ne.s32.totalorder %s21, %s24
      %p30 = scmp.eq.s32.totalorder %s11, 0
      %p31 = por %p29, %p30
      %p32 = scmp.ne.s32.totalorder %s21, %s24
      %p33 = scmp.eq.s32.totalorder %s16, 1
      %p34 = por %p32, %p33
      %p35 = scmp.ne.s32.totalorder %s24, %s25
      %p36 = scmp.eq.s32.totalorder %s16, 0
      %p37 = por %p35, %p36
      %p38 = scmp.ne.s32.totalorder %s24, %s25
      %p39 = scmp.eq.s32.totalorder %s17, 1
      %p40 = por %p38, %p39
      %p42 = scmp.ne.s32.totalorder %s25, %s41
      %p43 = scmp.eq.s32.totalorder %s17, 0
      %p44 = por %p42, %p43
      %s46 = sadd.s32 %s45, 1
      %p49 = scmp.eq.s32.totalorder %s11, 1
      %p50 = scmp.ne.s32.totalorder %s45, %s47
      %p51 = scmp.eq.s32.totalorder %s11, 0
      %p52 = por %p50, %p51
      %p53 = scmp.ne.s32.totalorder %s45, %s47
      %p54 = scmp.eq.s32.totalorder %s16, 1
      %p55 = por %p53, %p54
      %p56 = scmp.ne.s32.totalorder %s47, %s48
      %p57 = scmp.eq.s32.totalorder %s16, 0
      %p58 = por %p56, %p57
      %p59 = scmp.ne.s32.totalorder %s47, %s48
      %p60 = scmp.eq.s32.totalorder %s17, 1
      %p61 = por %p59, %p60
      %p63 = scmp.ne.s32.totalorder %s48, %s62
      %p64 = scmp.eq.s32.totalorder %s17, 0
      %p65 = por %p63, %p64
      %s66 = ssub.s32 %s11, %s18
      %p67 = scmp.eq.s32.totalorder %s66, 0
      %s69 = sadd.s32 %s68, 1
      %s70 = scalar_select %p67, %s68, %s69
      %p73 = pneg %p67
      %p74 = scmp.eq.s32.totalorder %s11, 1
      %p75 = por %p73, %p74
      %p76 = scmp.ne.s32.totalorder %s68, %s71
      %p77 = scmp.eq.s32.totalorder %s11, 0
      %p78 = por %p76, %p77
      %p79 = scmp.ne.s32.totalorder %s68, %s71
      %p80 = scmp.eq.s32.totalorder %s16, 1
      %p81 = por %p79, %p80
      %p82 = scmp.ne.s32.totalorder %s71, %s72
      %p83 = scmp.eq.s32.totalorder %s16, 0
      %p84 = por %p82, %p83
      %p85 = scmp.ne.s32.totalorder %s71, %s72
      %p86 = scmp.eq.s32.totalorder %s17, 1
      %p87 = por %p85, %p86
      %p89 = scmp.ne.s32.totalorder %s72, %s88
      %p90 = scmp.eq.s32.totalorder %s17, 0
      %p91 = por %p89, %p90
      %p92 = scmp.le.s32.totalorder 1, %s11
      %p93 = scmp.lt.s32.totalorder %s11, 3
      %p94 = pnand %p92, %p93
      %p95 = pneg %p94
      // Predicated region
      $region9: #{tpu_custom_call.1} parent=5 // pred_check
        _
      $region10: #{tpu_custom_call.1} parent=5 // pred_check_branch
        %97 = sbr.rel (%p94) target = $region12
      $region11: #{tpu_custom_call.1} parent=5 // pred_region
        %s98 = ssub.s32 %s11, 1
        // Predicated region
        $region13: #{tpu_custom_call.1} parent=11 // pred_check
          %p99 = pneg %p58
        $region14: #{tpu_custom_call.1} parent=11 // pred_check_branch
          %101 = sbr.rel (%p99) target = $region16
        $region15: #{tpu_custom_call.1} parent=11 // pred_region
          _
        $region16: #{tpu_custom_call.1} parent=11 // pred_fallthru
          _
      $region12: #{tpu_custom_call.1} parent=5 // pred_fallthru
        _
      %p102 = scmp.lt.s32.totalorder %s11, 2
      // Predicated region
      $region17: #{tpu_custom_call.1} parent=5 // pred_check
        %p103 = pneg %p102
      $region18: #{tpu_custom_call.1} parent=5 // pred_check_branch
        %105 = sbr.rel (%p103) target = $region20
      $region19: #{tpu_custom_call.1} parent=5 // pred_region
        // Predicated region
        $region21: #{tpu_custom_call.1} parent=19 // pred_check
          %p106 = pneg %p31
        $region22: #{tpu_custom_call.1} parent=19 // pred_check_branch
          %108 = sbr.rel (%p106) target = $region24
        $region23: #{tpu_custom_call.1} parent=19 // pred_region
          %s109 = smul.u32 16, %s11
          %p110 = scmp.lt.s32.totalorder %s109, 31
          %s111 = scalar_select %p110, %s109, 31
          %s112 = smul.addr %s111, 8
          %s113 = scalar_lea.vmem %s0, %s112
          %s114 = smul.u32 16, %s11
        $region24: #{tpu_custom_call.1} parent=19 // pred_fallthru
          _
      $region20: #{tpu_custom_call.1} parent=5 // pred_fallthru
        _
      %p115 = scmp.le.s32.totalorder 1, %s11
      %p116 = scmp.lt.s32.totalorder %s11, 3
      %p117 = pnand %p115, %p116
      %p118 = pneg %p117
      // Predicated region
      $region25: #{tpu_custom_call.1} parent=5 // pred_check
        _
      $region26: #{tpu_custom_call.1} parent=5 // pred_check_branch
        %120 = sbr.rel (%p117) target = $region28
      $region27: #{tpu_custom_call.1} parent=5 // pred_region
        %s121 = ssub.s32 %s11, 1
        %s122 = smul.u32 16, %s16
        %p123 = scmp.lt.s32.totalorder %s122, 31
        %s124 = scalar_select %p123, %s122, 31
        %s125 = smul.addr %s124, 8
        %s126 = scalar_lea.vmem %s0, %s125
        %p127 = pneg %p37
        %p128 = pneg %p34
        %p129 = pneg %p58
        %p130 = pneg %p55
        %p131 = pneg %p84
        %p132 = pneg %p81
        %s133 = sand.u32 %s71, 1
        %s134 = scalar_lea.sflag [#allocation3], %s133
        %s135 = sand.u32 %s71, 1
        %s136 = smul.addr %s135, 128
        %s137 = scalar_lea.vmem [#allocation2], %s136
        %s138 = smul.u32 16, %s16
        %p139 = scmp.lt.s32.totalorder %s138, 31
        %s140 = scalar_select %p139, %s138, 31
        %s141 = smul.addr %s140, 8
        %s142 = scalar_lea.vmem %s0, %s141
        %s143 = smul.u32 16, %s16
        %s144 = smul.u32 16, %s16
        %v145 = vld [vmem:[%s142] sm:$0xff]
        %v146 = vld [vmem:[%s142 + $0x8] sm:$0xff]
        %v147 = vld [vmem:[%s142 + $0x10] sm:$0xff]
        %v148 = vld [vmem:[%s142 + $0x18] sm:$0xff]
        %v149 = vld [vmem:[%s142 + $0x20] sm:$0xff]
        %v150 = vld [vmem:[%s142 + $0x28] sm:$0xff]
        %v151 = vld [vmem:[%s142 + $0x30] sm:$0xff]
        %v152 = vld [vmem:[%s142 + $0x38] sm:$0xff]
        %v153 = vld [vmem:[%s142 + $0x40] sm:$0xff]
        %v154 = vld [vmem:[%s142 + $0x48] sm:$0xff]
        %v155 = vld [vmem:[%s142 + $0x50] sm:$0xff]
        %v156 = vld [vmem:[%s142 + $0x58] sm:$0xff]
        %v157 = vld [vmem:[%s142 + $0x60] sm:$0xff]
        %v158 = vld [vmem:[%s142 + $0x68] sm:$0xff]
        %v159 = vld [vmem:[%s142 + $0x70] sm:$0xff]
        %v160 = vld [vmem:[%s142 + $0x78] sm:$0xff]
        %v161 = vld [vmem:[%s1] sm:$0xff]
        %v162 = vld [vmem:[%s1 + $0x8] sm:$0xff]
        %v163 = vld [vmem:[%s1 + $0x10] sm:$0xff]
        %v164 = vld [vmem:[%s1 + $0x18] sm:$0xff]
        %v165 = vld [vmem:[%s1 + $0x20] sm:$0xff]
        %v166 = vld [vmem:[%s1 + $0x28] sm:$0xff]
        %v167 = vld [vmem:[%s1 + $0x30] sm:$0xff]
        %v168 = vld [vmem:[%s1 + $0x38] sm:$0xff]
        %vm169 = vcmask 523264
        %v171 = vsel %vm169, %v145, 0
        %v174 = vsel %vm169, %v146, 0
        %v177 = vsel %vm169, %v147, 0
        %v180 = vsel %vm169, %v148, 0
        %v183 = vsel %vm169, %v149, 0
        %v186 = vsel %vm169, %v150, 0
        %v189 = vsel %vm169, %v151, 0
        %v192 = vsel %vm169, %v152, 0
        %v195 = vsel %vm169, %v153, 0
        %v198 = vsel %vm169, %v154, 0
        %v201 = vsel %vm169, %v155, 0
        %v204 = vsel %vm169, %v156, 0
        %v207 = vsel %vm169, %v157, 0
        %v210 = vsel %vm169, %v158, 0
        %v213 = vsel %vm169, %v159, 0
        %v216 = vsel %vm169, %v160, 0
        %218 = vmatprep.subr.mxu0 0.0
        %219 = vmatpush1.msra.mxu0 0.0
        %220 = vmatprep.subr.mxu0 0.0
        %221 = vmatpush1.msra.mxu0 0.0
        %222 = vmatprep.subr.mxu0 0.0
        %223 = vmatpush1.msra.mxu0 0.0
        %224 = vmatprep.subr.mxu0 0.0
        %225 = vmatpush1.msra.mxu0 0.0
        %226 = vmatprep.subr.mxu0 0.0
        %227 = vmatpush1.msra.mxu0 0.0
        %228 = vmatprep.subr.mxu0 0.0
        %229 = vmatpush1.msra.mxu0 0.0
        %230 = vmatprep.subr.mxu0 0.0
        %231 = vmatpush1.msra.mxu0 0.0
        %232 = vmatprep.subr.mxu0 0.0
        %233 = vmatpush1.msra.mxu0 0.0
        %234 = vmatprep.subr.mxu0 0.0
        %235 = vmatpush1.msra.mxu0 %v168
        %236 = vmatprep.subr.mxu0 0.0
        %237 = vmatpush1.msra.mxu0 %v167
        %238 = vmatprep.subr.mxu0 0.0
        %239 = vmatpush1.msra.mxu0 %v166
        %240 = vmatprep.subr.mxu0 0.0
        %241 = vmatpush1.msra.mxu0 %v165
        %242 = vmatprep.subr.mxu0 0.0
        %243 = vmatpush1.msra.mxu0 %v164
        %244 = vmatprep.subr.mxu0 0.0
        %245 = vmatpush1.msra.mxu0 %v163
        %246 = vmatprep.subr.mxu0 0.0
        %247 = vmatpush1.msra.mxu0 %v162
        %248 = vmatprep.subr.mxu0 0.0
        %249 = vmatpush1.msra.mxu0 %v161
        %250 = vmatprep.subr.mxu0 0.0
        %251 = vmatpush2.msra.mxu0 0.0
        %252 = vmatprep.subr.mxu0 0.0
        %253 = vmatpush2.msra.mxu0 0.0
        %254 = vmatprep.subr.mxu0 0.0
        %255 = vmatpush2.msra.mxu0 0.0
        %256 = vmatprep.subr.mxu0 0.0
        %257 = vmatpush2.msra.mxu0 0.0
        %258 = vmatprep.subr.mxu0 0.0
        %259 = vmatpush2.msra.mxu0 0.0
        %260 = vmatprep.subr.mxu0 0.0
        %261 = vmatpush2.msra.mxu0 0.0
        %262 = vmatprep.subr.mxu0 0.0
        %263 = vmatpush2.msra.mxu0 0.0
        %264 = vmatprep.subr.mxu0 0.0
        %265 = vmatpush2.msra.mxu0 0.0
        %266 = vmatprep.subr.mxu0 0.0
        %267 = vmatpush2.msra.mxu0 0.0
        %268 = vmatprep.subr.mxu0 0.0
        %269 = vmatpush2.msra.mxu0 0.0
        %270 = vmatprep.subr.mxu0 0.0
        %271 = vmatpush2.msra.mxu0 0.0
        %272 = vmatprep.subr.mxu0 0.0
        %273 = vmatpush2.msra.mxu0 0.0
        %274 = vmatprep.subr.mxu0 0.0
        %275 = vmatpush2.msra.mxu0 0.0
        %276 = vmatprep.subr.mxu0 0.0
        %277 = vmatpush2.msra.mxu0 0.0
        %278 = vmatprep.subr.mxu0 0.0
        %279 = vmatpush2.msra.mxu0 0.0
        %280 = vmatprep.subr.mxu0 0.0
        %281 = vmatpush2.msra.mxu0 0.0
        %282 = vmatprep.mubr.f32.mxu0 0.0
        %283 = vmatmul.mubr.f32.gmra.mxu0 %v171
        %v284 = vpop.f32.mrf.mxu0
        %v285 = vadd.f32 0.0, %v284
        %v286 = vpop.f32.mrf.mxu0
        %287 = vmatprep.mubr.f32.mxu0 0.0
        %288 = vmatmul.mubr.f32.gmra.mxu0 %v174
        %v289 = vpop.f32.mrf.mxu0
        %v290 = vadd.f32 0.0, %v289
        %v291 = vpop.f32.mrf.mxu0
        %292 = vmatprep.mubr.f32.mxu0 0.0
        %293 = vmatmul.mubr.f32.gmra.mxu0 %v177
        %v294 = vpop.f32.mrf.mxu0
        %v295 = vadd.f32 0.0, %v294
        %v296 = vpop.f32.mrf.mxu0
        %297 = vmatprep.mubr.f32.mxu0 0.0
        %298 = vmatmul.mubr.f32.gmra.mxu0 %v180
        %v299 = vpop.f32.mrf.mxu0
        %v300 = vadd.f32 0.0, %v299
        %v301 = vpop.f32.mrf.mxu0
        %302 = vmatprep.mubr.f32.mxu0 0.0
        %303 = vmatmul.mubr.f32.gmra.mxu0 %v183
        %v304 = vpop.f32.mrf.mxu0
        %v305 = vadd.f32 0.0, %v304
        %v306 = vpop.f32.mrf.mxu0
        %307 = vmatprep.mubr.f32.mxu0 0.0
        %308 = vmatmul.mubr.f32.gmra.mxu0 %v186
        %v309 = vpop.f32.mrf.mxu0
        %v310 = vadd.f32 0.0, %v309
        %v311 = vpop.f32.mrf.mxu0
        %312 = vmatprep.mubr.f32.mxu0 0.0
        %313 = vmatmul.mubr.f32.gmra.mxu0 %v189
        %v314 = vpop.f32.mrf.mxu0
        %v315 = vadd.f32 0.0, %v314
        %v316 = vpop.f32.mrf.mxu0
        %317 = vmatprep.mubr.f32.mxu0 0.0
        %318 = vmatmul.mubr.f32.gmra.mxu0 %v192
        %v319 = vpop.f32.mrf.mxu0
        %v320 = vadd.f32 0.0, %v319
        %v321 = vpop.f32.mrf.mxu0
        %322 = vmatprep.mubr.f32.mxu0 0.0
        %323 = vmatmul.mubr.f32.gmra.mxu0 %v195
        %v324 = vpop.f32.mrf.mxu0
        %v325 = vadd.f32 0.0, %v324
        %v326 = vpop.f32.mrf.mxu0
        %327 = vmatprep.mubr.f32.mxu0 0.0
        %328 = vmatmul.mubr.f32.gmra.mxu0 %v198
        %v329 = vpop.f32.mrf.mxu0
        %v330 = vadd.f32 0.0, %v329
        %v331 = vpop.f32.mrf.mxu0
        %332 = vmatprep.mubr.f32.mxu0 0.0
        %333 = vmatmul.mubr.f32.gmra.mxu0 %v201
        %v334 = vpop.f32.mrf.mxu0
        %v335 = vadd.f32 0.0, %v334
        %v336 = vpop.f32.mrf.mxu0
        %337 = vmatprep.mubr.f32.mxu0 0.0
        %338 = vmatmul.mubr.f32.gmra.mxu0 %v204
        %v339 = vpop.f32.mrf.mxu0
        %v340 = vadd.f32 0.0, %v339
        %v341 = vpop.f32.mrf.mxu0
        %342 = vmatprep.mubr.f32.mxu0 0.0
        %343 = vmatmul.mubr.f32.gmra.mxu0 %v207
        %v344 = vpop.f32.mrf.mxu0
        %v345 = vadd.f32 0.0, %v344
        %v346 = vpop.f32.mrf.mxu0
        %347 = vmatprep.mubr.f32.mxu0 0.0
        %348 = vmatmul.mubr.f32.gmra.mxu0 %v210
        %v349 = vpop.f32.mrf.mxu0
        %v350 = vadd.f32 0.0, %v349
        %v351 = vpop.f32.mrf.mxu0
        %352 = vmatprep.mubr.f32.mxu0 0.0
        %353 = vmatmul.mubr.f32.gmra.mxu0 %v213
        %v354 = vpop.f32.mrf.mxu0
        %v355 = vadd.f32 0.0, %v354
        %v356 = vpop.f32.mrf.mxu0
        %357 = vmatprep.mubr.f32.mxu0 0.0
        %358 = vmatmul.mubr.f32.gmra.mxu0 %v216
        %v359 = vpop.f32.mrf.mxu0
        %v360 = vadd.f32 0.0, %v359
        %v361 = vpop.f32.mrf.mxu0
        %362 = vdwg.mxu0
        %363 = vst [vmem:[%s137] sm:$0xff] %v285
        %364 = vst [vmem:[%s137 + $0x8] sm:$0xff] %v290
        %365 = vst [vmem:[%s137 + $0x10] sm:$0xff] %v295
        %366 = vst [vmem:[%s137 + $0x18] sm:$0xff] %v300
        %367 = vst [vmem:[%s137 + $0x20] sm:$0xff] %v305
        %368 = vst [vmem:[%s137 + $0x28] sm:$0xff] %v310
        %369 = vst [vmem:[%s137 + $0x30] sm:$0xff] %v315
        %370 = vst [vmem:[%s137 + $0x38] sm:$0xff] %v320
        %371 = vst [vmem:[%s137 + $0x40] sm:$0xff] %v325
        %372 = vst [vmem:[%s137 + $0x48] sm:$0xff] %v330
        %373 = vst [vmem:[%s137 + $0x50] sm:$0xff] %v335
        %374 = vst [vmem:[%s137 + $0x58] sm:$0xff] %v340
        %375 = vst [vmem:[%s137 + $0x60] sm:$0xff] %v345
        %376 = vst [vmem:[%s137 + $0x68] sm:$0xff] %v350
        %377 = vst [vmem:[%s137 + $0x70] sm:$0xff] %v355
        %378 = vst [vmem:[%s137 + $0x78] sm:$0xff] %v360
        %s379 = sand.u32 %s71, 1
        %s380 = scalar_lea.sflag [#allocation3], %s379
        %s381 = sand.u32 %s71, 1
        %s382 = smul.addr %s381, 128
        %s383 = scalar_lea.vmem [#allocation2], %s382
        // Predicated region
        $region29: #{tpu_custom_call.1} parent=27 // pred_check
          %p384 = pneg %p81
        $region30: #{tpu_custom_call.1} parent=27 // pred_check_branch
          %386 = sbr.rel (%p384) target = $region32
        $region31: #{tpu_custom_call.1} parent=27 // pred_region
          %s387 = smul.u32 16, %s16
          %s389 = ssub.s32 2048, 2048
          %390 = vsyncadd %s380, %s389
          %s391 = smul.addr %s387, 128
          %s392 = scalar_lea.hbm %s2, %s391
          %s393 = sshll.u32 %s383, 4
          %s394 = int_to_ptr.vmem [resolvable:$true] %s393
          %399 = dma.vmem_to_hbm [thread:$0]  %s394, 2048, %s392, %s380, 128, 128, 8
        $region32: #{tpu_custom_call.1} parent=27 // pred_fallthru
          _
      $region28: #{tpu_custom_call.1} parent=5 // pred_fallthru
        _
      %p400 = scmp.le.s32.totalorder 2, %s11
      // Predicated region
      $region33: #{tpu_custom_call.1} parent=5 // pred_check
        %p401 = pneg %p400
      $region34: #{tpu_custom_call.1} parent=5 // pred_check_branch
        %403 = sbr.rel (%p401) target = $region36
      $region35: #{tpu_custom_call.1} parent=5 // pred_region
        %s404 = ssub.s32 %s11, 2
        // Predicated region
        $region37: #{tpu_custom_call.1} parent=35 // pred_check
          %p405 = pneg %p87
        $region38: #{tpu_custom_call.1} parent=35 // pred_check_branch
          %407 = sbr.rel (%p405) target = $region40
        $region39: #{tpu_custom_call.1} parent=35 // pred_region
          %s408 = sand.u32 %s72, 1
          %s409 = scalar_lea.sflag [#allocation3], %s408
          %s410 = sand.u32 %s72, 1
          %s411 = smul.addr %s410, 128
          %s412 = scalar_lea.vmem [#allocation2], %s411
          %413 = dma.done %s409, 2048
        $region40: #{tpu_custom_call.1} parent=35 // pred_fallthru
          _
      $region36: #{tpu_custom_call.1} parent=5 // pred_fallthru
        _
    $region6: #{tpu_custom_call.1} parent=1 // loop_footer
      %s15 = sadd.s32 1, %s11
    $region7: #{tpu_custom_call.1} parent=1 // loop_footer_branch
      %10 = sbr.rel target = $region3
    $region8: #{tpu_custom_call.1} parent=1 // loop_exit
      _
    %414 = vsyncpa [#allocation3], 1
    %s415 = scalar_lea.sflag [#allocation3], 1
    %416 = vsyncpa %s415, 1

</llo_original>
